<compile_context>
chip_gen: v7x
topology: tpu7x:2x2x1
jax: 0.10.0
libtpu: 0.0.40
codegen_flags: <defaults>
</compile_context>

<pallas_src>
import functools

import jax
import jax.numpy as jnp
from jax.experimental import pallas as pl
from jax.experimental.pallas import tpu as pltpu

DEFAULT_TILE_N = 2048   # rows per grid step for large graphs (~1 MiB f32 x-tile)
MIN_TILE_N = 128        # don't shrink tiles below this when splitting for megacore


def _round_up(n, m):
    return ((n + m - 1) // m) * m


# ----------------------------------------------------------------------------
# Kernel: fused 2-layer MLP  (x @ W1 + b1 -> relu -> @ W2 + b2)
# One (tn, H) row tile per grid step; weights/biases stay VMEM-resident.
# Output is written directly at its true width O (lane-masked store in VMEM,
# dense narrow writeback DMA to HBM).
# ----------------------------------------------------------------------------
def decoder_mlp_kernel(x_ref, w1_ref, b1_ref, w2_ref, b2_ref, o_ref):
    x = x_ref[...]                                                    # (tn, H)  f32
    h = jnp.dot(x, w1_ref[...], preferred_element_type=jnp.float32)  # (tn, H)  MXU
    h = jnp.maximum(h + b1_ref[...], 0.0)                            # bias + ReLU (VPU)
    o = jnp.dot(h, w2_ref[...], preferred_element_type=jnp.float32)  # (tn, O)  MXU
    o_ref[...] = (o + b2_ref[...]).astype(o_ref.dtype)


def pack_params(w1, b1, w2, b2):
    """One-time parameter packing (call once, reuse across forward calls).

    Weights stay f32 (in_features x out_features, i.e. PyTorch W^T);
    biases become (1, fan_out) rows so they broadcast inside the kernel.
    """
    return (jnp.asarray(w1, jnp.float32),
            jnp.asarray(b1, jnp.float32).reshape(1, -1),
            jnp.asarray(w2, jnp.float32),
            jnp.asarray(b2, jnp.float32).reshape(1, -1))


@functools.partial(jax.jit, static_argnames=("tile_n",))
def decoder_forward(x, w1, b1_row, w2, b2_row, *, tile_n=DEFAULT_TILE_N):
    """Decoder forward pass on TPU via Pallas.

    x      : (N, H) f32 node features (graph.x)
    w1     : (H, H) first Linear weight (in x out)
    b1_row : (1, H) first Linear bias
    w2     : (H, O) second Linear weight (in x out)
    b2_row : (1, O) second Linear bias
    returns: (N, O) f32
    """
    N, H = x.shape
    O = w2.shape[1]

    # --- row tiling ------------------------------------------------------
    # Large graphs: tile_n rows per step. Mid-size graphs: split into >=4 steps
    # (so a "parallel" grid axis can shard across v7x's 2 TensorCores) but keep
    # tiles >= MIN_TILE_N rows. Tiny graphs: one tight tile.
    tn = min(tile_n, max(_round_up(pl.cdiv(N, 4), 8), MIN_TILE_N))
    tn = min(tn, _round_up(N, 8))
    tn = max(tn, 8)
    grid = (pl.cdiv(N, tn),)   # ragged last tile handled by Pallas edge-block masking

    cost = pl.CostEstimate(
        flops=2 * N * H * H + 2 * N * H * O,
        transcendentals=0,
        bytes_accessed=(N * H * 4            # x read
                        + H * H * 4 + H * 4  # W1, b1
                        + H * O * 4 + O * 4  # W2, b2
                        + N * O * 4),        # output write
    )

    return pl.pallas_call(
        decoder_mlp_kernel,
        out_shape=jax.ShapeDtypeStruct((N, O), jnp.float32),
        grid_spec=pltpu.PrefetchScalarGridSpec(
            num_scalar_prefetch=0,
            grid=grid,
            in_specs=[
                pl.BlockSpec((tn, H), lambda i: (i, 0)),   # x row tile
                pl.BlockSpec((H, H), lambda i: (0, 0)),    # W1 (VMEM-resident)
                pl.BlockSpec((1, H), lambda i: (0, 0)),    # b1 (resident)
                pl.BlockSpec((H, O), lambda i: (0, 0)),    # W2 (resident)
                pl.BlockSpec((1, O), lambda i: (0, 0)),    # b2 (resident)
            ],
            out_specs=pl.BlockSpec((tn, O), lambda i: (i, 0)),
        ),
        compiler_params=pltpu.CompilerParams(
            dimension_semantics=("parallel",),
        ),
        cost_estimate=cost,
    )(x, w1, b1_row, w2, b2_row)


# ----------------------------------------------------------------------------
# Deterministic parameter initialization (PyTorch Linear init:
# uniform(-1/sqrt(fan_in), 1/sqrt(fan_in)) ), seeded with PRNGKey(0).
# ----------------------------------------------------------------------------
def init_params(key, hidden_size, output_size):
    k1, k2, k3, k4 = jax.random.split(key, 4)
    bound = 1.0 / (hidden_size ** 0.5)
    w1 = jax.random.uniform(k1, (hidden_size, hidden_size), jnp.float32,
                            minval=-bound, maxval=bound)
    b1 = jax.random.uniform(k2, (hidden_size,), jnp.float32,
                            minval=-bound, maxval=bound)
    w2 = jax.random.uniform(k3, (hidden_size, output_size), jnp.float32,
                            minval=-bound, maxval=bound)
    b2 = jax.random.uniform(k4, (output_size,), jnp.float32,
                            minval=-bound, maxval=bound)
    return w1, b1, w2, b2


def _reference(x, w1, b1, w2, b2):
    h = jnp.maximum(
        jnp.dot(x, w1, precision=jax.lax.Precision.HIGHEST) + b1[None, :], 0.0)
    return jnp.dot(h, w2, precision=jax.lax.Precision.HIGHEST) + b2[None, :]


if __name__ == "__main__":
    # graph.x : (num_nodes, hidden_size=128) -> out : (num_nodes, 2)
    H, O = 128, 2

    key = jax.random.PRNGKey(0)
    kx, kp = jax.random.split(key)
    w1, b1, w2, b2 = init_params(kp, H, O)
    packed = pack_params(w1, b1, w2, b2)   # one-time packing, reused below

    # N=1000: not a multiple of the 256-row tile -> 4 grid steps + ragged last tile.
    # N=13:   tiny ragged graph -> single partial tile (edge-block masking path).
    for N in (1000, 13):
        x = jax.random.normal(jax.random.fold_in(kx, N), (N, H), dtype=jnp.float32)

        out = decoder_forward(x, *packed)
        out = jax.block_until_ready(out)

        ref = _reference(x, w1, b1, w2, b2)
        assert out.shape == (N, O)
        assert bool(jnp.all(jnp.isfinite(out)))
        assert bool(jnp.allclose(out, ref, atol=1e-2, rtol=1e-2)), (
            N, float(jnp.max(jnp.abs(out - ref))))

    print("KERNEL_OK")
</pallas_src>

<mosaic_0001>
module attributes {stable_mosaic.version = 11 : i64} {
  func.func @decoder_mlp_kernel(%arg0: i32, %arg1: memref<256x128xf32, #tpu.memory_space<vmem>>, %arg2: memref<128x128xf32, #tpu.memory_space<vmem>>, %arg3: memref<1x128xf32, #tpu.memory_space<vmem>>, %arg4: memref<128x2xf32, #tpu.memory_space<vmem>>, %arg5: memref<1x2xf32, #tpu.memory_space<vmem>>, %arg6: memref<256x2xf32, #tpu.memory_space<vmem>>) attributes {dimension_semantics = [#tpu.dimension_semantics<parallel>], iteration_bounds = array<i64: 4>, scalar_prefetch = 0 : i64, scratch_operands = 0 : i64, tpu.core_type = #tpu.core_type<tc>, window_params = [{transform_indices = @transform_0, window_bounds = array<i64: 256, 128>}, {pipeline_mode = #tpu.pipeline_mode<synchronous>, transform_indices = @transform_1, window_bounds = array<i64: 128, 128>}, {pipeline_mode = #tpu.pipeline_mode<synchronous>, transform_indices = @transform_2, window_bounds = array<i64: 1, 128>}, {pipeline_mode = #tpu.pipeline_mode<synchronous>, transform_indices = @transform_3, window_bounds = array<i64: 128, 2>}, {pipeline_mode = #tpu.pipeline_mode<synchronous>, transform_indices = @transform_4, window_bounds = array<i64: 1, 2>}, {transform_indices = @transform_5, window_bounds = array<i64: 256, 2>}]} {
    %c0 = arith.constant 0 : index
    %c0_0 = arith.constant 0 : index
    %0 = vector.load %arg1[%c0, %c0_0] : memref<256x128xf32, #tpu.memory_space<vmem>>, vector<256x128xf32>
    %c0_1 = arith.constant 0 : index
    %c0_2 = arith.constant 0 : index
    %1 = vector.load %arg2[%c0_1, %c0_2] : memref<128x128xf32, #tpu.memory_space<vmem>>, vector<128x128xf32>
    %cst = arith.constant dense<0.000000e+00> : vector<256x128xf32>
    %2 = tpu.matmul %0, %1, %cst {dimension_numbers = #tpu.dot_dimension_numbers<[1], [0], [0], [1], [0, 0, 1, 1], [], []>} : vector<256x128xf32>, vector<128x128xf32>, vector<256x128xf32> -> vector<256x128xf32>
    %c0_3 = arith.constant 0 : index
    %c0_4 = arith.constant 0 : index
    %3 = vector.load %arg3[%c0_3, %c0_4] : memref<1x128xf32, #tpu.memory_space<vmem>>, vector<1x128xf32>
    %4 = vector.broadcast %3 : vector<1x128xf32> to vector<256x128xf32>
    %5 = arith.addf %2, %4 : vector<256x128xf32>
    %cst_5 = arith.constant 0.000000e+00 : f32
    %6 = vector.broadcast %cst_5 : f32 to vector<256x128xf32>
    %7 = arith.maximumf %5, %6 : vector<256x128xf32>
    %c0_6 = arith.constant 0 : index
    %c0_7 = arith.constant 0 : index
    %8 = vector.load %arg4[%c0_6, %c0_7] : memref<128x2xf32, #tpu.memory_space<vmem>>, vector<128x2xf32>
    %cst_8 = arith.constant dense<0.000000e+00> : vector<256x2xf32>
    %9 = tpu.matmul %7, %8, %cst_8 {dimension_numbers = #tpu.dot_dimension_numbers<[1], [0], [0], [1], [0, 0, 1, 1], [], []>} : vector<256x128xf32>, vector<128x2xf32>, vector<256x2xf32> -> vector<256x2xf32>
    %c0_9 = arith.constant 0 : index
    %c0_10 = arith.constant 0 : index
    %10 = vector.load %arg5[%c0_9, %c0_10] : memref<1x2xf32, #tpu.memory_space<vmem>>, vector<1x2xf32>
    %11 = vector.broadcast %10 : vector<1x2xf32> to vector<256x2xf32>
    %12 = arith.addf %9, %11 : vector<256x2xf32>
    %c0_11 = arith.constant 0 : index
    %c0_12 = arith.constant 0 : index
    %13 = vector.load %arg6[%c0_11, %c0_12] : memref<256x2xf32, #tpu.memory_space<vmem>>, vector<256x2xf32>
    tpu.vector_store %arg6[%c0_11, %c0_12], %12 {strides = array<i32>} : memref<256x2xf32, #tpu.memory_space<vmem>>, vector<256x2xf32>,
    return
  }
  func.func @transform_0(%arg0: i32) -> (i32, i32) {
    %c0_i32 = arith.constant 0 : i32
    %c0_i32_0 = arith.constant 0 : i32
    return %arg0, %c0_i32 : i32, i32
  }
  func.func @transform_1(%arg0: i32) -> (i32, i32) {
    %c0_i32 = arith.constant 0 : i32
    %c0_i32_0 = arith.constant 0 : i32
    %c0_i32_1 = arith.constant 0 : i32
    return %c0_i32, %c0_i32_0 : i32, i32
  }
  func.func @transform_2(%arg0: i32) -> (i32, i32) {
    %c0_i32 = arith.constant 0 : i32
    %c0_i32_0 = arith.constant 0 : i32
    %c0_i32_1 = arith.constant 0 : i32
    return %c0_i32, %c0_i32_0 : i32, i32
  }
  func.func @transform_3(%arg0: i32) -> (i32, i32) {
    %c0_i32 = arith.constant 0 : i32
    %c0_i32_0 = arith.constant 0 : i32
    %c0_i32_1 = arith.constant 0 : i32
    return %c0_i32, %c0_i32_0 : i32, i32
  }
  func.func @transform_4(%arg0: i32) -> (i32, i32) {
    %c0_i32 = arith.constant 0 : i32
    %c0_i32_0 = arith.constant 0 : i32
    %c0_i32_1 = arith.constant 0 : i32
    return %c0_i32, %c0_i32_0 : i32, i32
  }
  func.func @transform_5(%arg0: i32) -> (i32, i32) {
    %c0_i32 = arith.constant 0 : i32
    %c0_i32_0 = arith.constant 0 : i32
    return %arg0, %c0_i32 : i32, i32
  }
}

</mosaic_0001>

<llo_original>
// kernel: decoder_forward.1
$region0: #{decoder_forward.1}
  #allocation0 [shape = 'u32[]', space=smem, size = 0x4, offset = 0x4, fixed_abs, tag = 'smem constant byte address 0x4 - core index']
  #allocation1 [shape = 'u32[144,128]{1,0:T(1,128)}', space=vmem, size = 0x12000, scoped, tag = 'internal scratch']
  %s0 = inlined_call_operand.hbm [shape: f32[1000,128], index: 0, kind: input, shape index: {}]
  %s1 = inlined_call_operand.vmem [shape: f32[128,128], index: 1, kind: input, shape index: {}]
  %s2 = inlined_call_operand.vmem [shape: f32[1,128], index: 2, kind: input, shape index: {}]
  %s3 = inlined_call_operand.vmem [shape: f32[128,2], index: 3, kind: input, shape index: {}]
  %s4 = inlined_call_operand.vmem [shape: f32[1,2], index: 4, kind: input, shape index: {}]
  %s5 = inlined_call_operand.vmem [shape: f32[1000,2], index: 5, kind: output, shape index: {}]
  %s6 = sld [smem:[#allocation0]]
  $region105: #{decoder_forward.1} parent=0
    _
  %s8 = ssub.s32 1, %s6
  %s9 = scalar_select 0, %s8, %s6
  $region1: #{decoder_forward.1} parent=0
    #allocation2 [shape = 'u8[262144]{0}', space=vmem, size = 0x40000, scoped, tag = 'input window, operand 0']
    #allocation3 [shape = 's32[2]{0}', space=sflag, size = 0x8, scoped, tag = 'scoped memory for decoder_forward.1']
    #allocation4 [shape = 'u8[262144]{0}', space=vmem, size = 0x40000, scoped, tag = 'output window, operand 0']
    %10 = vsyncpa [#allocation3], 0
    %s11 = scalar_lea.sflag [#allocation3], 1
    %12 = vsyncpa %s11, 0
    loop: start=0, step=1, limit=6
    $region2: #{decoder_forward.1} parent=1 // loop_pre_header
      _
    $region3: #{decoder_forward.1} parent=1 // loop_header
      %s14 = sphi 0, %s18
      %p15 = scmp.ge.s32.totalorder %s14, 6
      %s24 = sphi 0, %s26
      %s27 = sphi 0, %s24
      %s28 = sphi 0, %s27
      %s44 = sphi 0, %s28
      %s48 = sphi 0, %s48
      %s50 = sphi 0, %s48
      %s51 = sphi 0, %s50
      %s65 = sphi 0, %s51
      %s69 = sphi 0, %s69
      %s71 = sphi 0, %s69
      %s72 = sphi 0, %s71
      %s86 = sphi 0, %s72
      %s90 = sphi 0, %s90
      %s92 = sphi 0, %s90
      %s93 = sphi 0, %s92
      %s107 = sphi 0, %s93
      %s111 = sphi 0, %s111
      %s113 = sphi 0, %s111
      %s114 = sphi 0, %s113
      %s128 = sphi 0, %s114
      %s134 = sphi 0, %s136
      %s137 = sphi 0, %s134
      %s138 = sphi 0, %s137
      %s154 = sphi 0, %s138
    $region4: #{decoder_forward.1} parent=1 // loop_header_branch
      %17 = sbr.rel (%p15) target = $region8
    $region5: #{decoder_forward.1} parent=1 // loop_body
      %s19 = ssub.s32 %s14, 1
      %s20 = ssub.s32 %s14, 2
      %s21 = sadd.s32 %s14, 1
      %s22 = ssub.s32 %s14, %s21
      %p23 = scmp.eq.s32.totalorder %s22, 0
      %s25 = sadd.s32 %s24, 1
      %s26 = scalar_select %p23, %s24, %s25
      %p29 = pneg %p23
      %p30 = scmp.eq.s32.totalorder %s14, 3
      %p31 = por %p29, %p30
      %p32 = scmp.ne.s32.totalorder %s24, %s27
      %p33 = scmp.eq.s32.totalorder %s14, 0
      %p34 = por %p32, %p33
      %p35 = scmp.ne.s32.totalorder %s24, %s27
      %p36 = scmp.eq.s32.totalorder %s19, 3
      %p37 = por %p35, %p36
      %p38 = scmp.ne.s32.totalorder %s27, %s28
      %p39 = scmp.eq.s32.totalorder %s19, 0
      %p40 = por %p38, %p39
      %p41 = scmp.ne.s32.totalorder %s27, %s28
      %p42 = scmp.eq.s32.totalorder %s20, 3
      %p43 = por %p41, %p42
      %p45 = scmp.ne.s32.totalorder %s28, %s44
      %p46 = scmp.eq.s32.totalorder %s20, 0
      %p47 = por %p45, %p46
      %s49 = sadd.s32 %s48, 1
      %p52 = scmp.eq.s32.totalorder %s14, 3
      %p53 = scmp.ne.s32.totalorder %s48, %s50
      %p54 = scmp.eq.s32.totalorder %s14, 0
      %p55 = por %p53, %p54
      %p56 = scmp.ne.s32.totalorder %s48, %s50
      %p57 = scmp.eq.s32.totalorder %s19, 3
      %p58 = por %p56, %p57
      %p59 = scmp.ne.s32.totalorder %s50, %s51
      %p60 = scmp.eq.s32.totalorder %s19, 0
      %p61 = por %p59, %p60
      %p62 = scmp.ne.s32.totalorder %s50, %s51
      %p63 = scmp.eq.s32.totalorder %s20, 3
      %p64 = por %p62, %p63
      %p66 = scmp.ne.s32.totalorder %s51, %s65
      %p67 = scmp.eq.s32.totalorder %s20, 0
      %p68 = por %p66, %p67
      %s70 = sadd.s32 %s69, 1
      %p73 = scmp.eq.s32.totalorder %s14, 3
      %p74 = scmp.ne.s32.totalorder %s69, %s71
      %p75 = scmp.eq.s32.totalorder %s14, 0
      %p76 = por %p74, %p75
      %p77 = scmp.ne.s32.totalorder %s69, %s71
      %p78 = scmp.eq.s32.totalorder %s19, 3
      %p79 = por %p77, %p78
      %p80 = scmp.ne.s32.totalorder %s71, %s72
      %p81 = scmp.eq.s32.totalorder %s19, 0
      %p82 = por %p80, %p81
      %p83 = scmp.ne.s32.totalorder %s71, %s72
      %p84 = scmp.eq.s32.totalorder %s20, 3
      %p85 = por %p83, %p84
      %p87 = scmp.ne.s32.totalorder %s72, %s86
      %p88 = scmp.eq.s32.totalorder %s20, 0
      %p89 = por %p87, %p88
      %s91 = sadd.s32 %s90, 1
      %p94 = scmp.eq.s32.totalorder %s14, 3
      %p95 = scmp.ne.s32.totalorder %s90, %s92
      %p96 = scmp.eq.s32.totalorder %s14, 0
      %p97 = por %p95, %p96
      %p98 = scmp.ne.s32.totalorder %s90, %s92
      %p99 = scmp.eq.s32.totalorder %s19, 3
      %p100 = por %p98, %p99
      %p101 = scmp.ne.s32.totalorder %s92, %s93
      %p102 = scmp.eq.s32.totalorder %s19, 0
      %p103 = por %p101, %p102
      %p104 = scmp.ne.s32.totalorder %s92, %s93
      %p105 = scmp.eq.s32.totalorder %s20, 3
      %p106 = por %p104, %p105
      %p108 = scmp.ne.s32.totalorder %s93, %s107
      %p109 = scmp.eq.s32.totalorder %s20, 0
      %p110 = por %p108, %p109
      %s112 = sadd.s32 %s111, 1
      %p115 = scmp.eq.s32.totalorder %s14, 3
      %p116 = scmp.ne.s32.totalorder %s111, %s113
      %p117 = scmp.eq.s32.totalorder %s14, 0
      %p118 = por %p116, %p117
      %p119 = scmp.ne.s32.totalorder %s111, %s113
      %p120 = scmp.eq.s32.totalorder %s19, 3
      %p121 = por %p119, %p120
      %p122 = scmp.ne.s32.totalorder %s113, %s114
      %p123 = scmp.eq.s32.totalorder %s19, 0
      %p124 = por %p122, %p123
      %p125 = scmp.ne.s32.totalorder %s113, %s114
      %p126 = scmp.eq.s32.totalorder %s20, 3
      %p127 = por %p125, %p126
      %p129 = scmp.ne.s32.totalorder %s114, %s128
      %p130 = scmp.eq.s32.totalorder %s20, 0
      %p131 = por %p129, %p130
      %s132 = ssub.s32 %s14, %s21
      %p133 = scmp.eq.s32.totalorder %s132, 0
      %s135 = sadd.s32 %s134, 1
      %s136 = scalar_select %p133, %s134, %s135
      %p139 = pneg %p133
      %p140 = scmp.eq.s32.totalorder %s14, 3
      %p141 = por %p139, %p140
      %p142 = scmp.ne.s32.totalorder %s134, %s137
      %p143 = scmp.eq.s32.totalorder %s14, 0
      %p144 = por %p142, %p143
      %p145 = scmp.ne.s32.totalorder %s134, %s137
      %p146 = scmp.eq.s32.totalorder %s19, 3
      %p147 = por %p145, %p146
      %p148 = scmp.ne.s32.totalorder %s137, %s138
      %p149 = scmp.eq.s32.totalorder %s19, 0
      %p150 = por %p148, %p149
      %p151 = scmp.ne.s32.totalorder %s137, %s138
      %p152 = scmp.eq.s32.totalorder %s20, 3
      %p153 = por %p151, %p152
      %p155 = scmp.ne.s32.totalorder %s138, %s154
      %p156 = scmp.eq.s32.totalorder %s20, 0
      %p157 = por %p155, %p156
      %p158 = scmp.le.s32.totalorder 1, %s14
      %p159 = scmp.lt.s32.totalorder %s14, 5
      %p160 = pnand %p158, %p159
      %p161 = pneg %p160
      // Predicated region
      $region9: #{decoder_forward.1} parent=5 // pred_check
        _
      $region10: #{decoder_forward.1} parent=5 // pred_check_branch
        %163 = sbr.rel (%p160) target = $region12
      $region11: #{decoder_forward.1} parent=5 // pred_region
        %s164 = ssub.s32 %s14, 1
        // Predicated region
        $region13: #{decoder_forward.1} parent=11 // pred_check
          %p165 = pneg %p61
        $region14: #{decoder_forward.1} parent=11 // pred_check_branch
          %167 = sbr.rel (%p165) target = $region16
        $region15: #{decoder_forward.1} parent=11 // pred_region
          _
        $region16: #{decoder_forward.1} parent=11 // pred_fallthru
          _
        // Predicated region
        $region17: #{decoder_forward.1} parent=11 // pred_check
          %p168 = pneg %p82
        $region18: #{decoder_forward.1} parent=11 // pred_check_branch
          %170 = sbr.rel (%p168) target = $region20
        $region19: #{decoder_forward.1} parent=11 // pred_region
          _
        $region20: #{decoder_forward.1} parent=11 // pred_fallthru
          _
        // Predicated region
        $region21: #{decoder_forward.1} parent=11 // pred_check
          %p171 = pneg %p103
        $region22: #{decoder_forward.1} parent=11 // pred_check_branch
          %173 = sbr.rel (%p171) target = $region24
        $region23: #{decoder_forward.1} parent=11 // pred_region
          _
        $region24: #{decoder_forward.1} parent=11 // pred_fallthru
          _
        // Predicated region
        $region25: #{decoder_forward.1} parent=11 // pred_check
          %p174 = pneg %p124
        $region26: #{decoder_forward.1} parent=11 // pred_check_branch
          %176 = sbr.rel (%p174) target = $region28
        $region27: #{decoder_forward.1} parent=11 // pred_region
          _
        $region28: #{decoder_forward.1} parent=11 // pred_fallthru
          _
      $region12: #{decoder_forward.1} parent=5 // pred_fallthru
        _
      %p177 = scmp.lt.s32.totalorder %s14, 4
      // Predicated region
      $region29: #{decoder_forward.1} parent=5 // pred_check
        %p178 = pneg %p177
      $region30: #{decoder_forward.1} parent=5 // pred_check_branch
        %180 = sbr.rel (%p178) target = $region32
      $region31: #{decoder_forward.1} parent=5 // pred_region
        // Predicated region
        $region33: #{decoder_forward.1} parent=31 // pred_check
          %p181 = pneg %p34
        $region34: #{decoder_forward.1} parent=31 // pred_check_branch
          %183 = sbr.rel (%p181) target = $region36
        $region35: #{decoder_forward.1} parent=31 // pred_region
          %s184 = sand.u32 %s24, 1
          %s185 = scalar_lea.sflag [#allocation3], %s184
          %s186 = sand.u32 %s24, 1
          %s187 = smul.addr %s186, 256
          %s188 = scalar_lea.vmem [#allocation2], %s187
          %s189 = smul.u32 32, %s14
          %s190 = ssub.s32 125, %s189
          %p191 = scmp.lt.s32.totalorder %s190, 32
          %s192 = scalar_select %p191, %s190, 32
          %s193 = smul.u32 128, %s192
          %s195 = ssub.s32 4096, %s193
          %196 = vsyncadd %s185, %s195
          %p197 = scmp.ne.s32.totalorder 0, %s193
          %s198 = smul.addr %s189, 128
          %s199 = scalar_lea.hbm %s0, %s198
          %s200 = smul.u32 8, %s192
          %s201 = sshll.u32 %s188, 4
          %s202 = int_to_ptr.vmem [resolvable:$true] %s201
          %s203 = sshll.u32 %s200, 4
          %207 = dma.hbm_to_vmem [thread:$0]  (%p197), %s199, %s203, %s202, %s185, 128, 128, 8
        $region36: #{decoder_forward.1} parent=31 // pred_fallthru
          _
      $region32: #{decoder_forward.1} parent=5 // pred_fallthru
        _
      %p208 = scmp.le.s32.totalorder 1, %s14
      %p209 = scmp.lt.s32.totalorder %s14, 5
      %p210 = pnand %p208, %p209
      %p211 = pneg %p210
      // Predicated region
      $region37: #{decoder_forward.1} parent=5 // pred_check
        _
      $region38: #{decoder_forward.1} parent=5 // pred_check_branch
        %213 = sbr.rel (%p210) target = $region40
      $region39: #{decoder_forward.1} parent=5 // pred_region
        %s214 = ssub.s32 %s14, 1
        %s215 = sand.u32 %s27, 1
        %s216 = scalar_lea.sflag [#allocation3], %s215
        %s217 = sand.u32 %s27, 1
        %s218 = smul.addr %s217, 256
        %s219 = scalar_lea.vmem [#allocation2], %s218
        // Predicated region
        $region41: #{decoder_forward.1} parent=39 // pred_check
          %p220 = pneg %p40
        $region42: #{decoder_forward.1} parent=39 // pred_check_branch
          %222 = sbr.rel (%p220) target = $region44
        $region43: #{decoder_forward.1} parent=39 // pred_region
          %223 = dma.done %s216, 4096
        $region44: #{decoder_forward.1} parent=39 // pred_fallthru
          _
        %s224 = sand.u32 %s27, 1
        %s225 = scalar_lea.sflag [#allocation3], %s224
        %s226 = sand.u32 %s27, 1
        %s227 = smul.addr %s226, 256
        %s228 = scalar_lea.vmem [#allocation2], %s227
        %p229 = pneg %p40
        %p230 = pneg %p37
        %p231 = pneg %p61
        %p232 = pneg %p58
        %p233 = pneg %p82
        %p234 = pneg %p79
        %p235 = pneg %p103
        %p236 = pneg %p100
        %p237 = pneg %p124
        %p238 = pneg %p121
        %p239 = pneg %p150
        %p240 = pneg %p147
        %s241 = sand.u32 %s137, 1
        %s242 = sand.u32 %s137, 1
        %s243 = smul.addr %s242, 256
        %s244 = scalar_lea.vmem [#allocation4], %s243
        %s245 = smul.u32 32, %s19
        %s246 = ssub.s32 125, %s245
        %p247 = scmp.lt.s32.totalorder %s246, 32
        %s248 = scalar_select %p247, %s246, 32
        %s249 = smul.u32 128, %s248
        %s250 = smul.u32 32, %s19
        %s251 = ssub.s32 125, %s250
        %p252 = scmp.lt.s32.totalorder %s251, 32
        %s253 = scalar_select %p252, %s251, 32
        %s254 = smul.u32 128, %s253
        %v255 = vld [vmem:[%s219] sm:$0xff]
        %v256 = vld [vmem:[%s219 + $0x8] sm:$0xff]
        %v257 = vld [vmem:[%s219 + $0x10] sm:$0xff]
        %v258 = vld [vmem:[%s219 + $0x18] sm:$0xff]
        %v259 = vld [vmem:[%s219 + $0x20] sm:$0xff]
        %v260 = vld [vmem:[%s219 + $0x28] sm:$0xff]
        %v261 = vld [vmem:[%s219 + $0x30] sm:$0xff]
        %v262 = vld [vmem:[%s219 + $0x38] sm:$0xff]
        %v263 = vld [vmem:[%s219 + $0x40] sm:$0xff]
        %v264 = vld [vmem:[%s219 + $0x48] sm:$0xff]
        %v265 = vld [vmem:[%s219 + $0x50] sm:$0xff]
        %v266 = vld [vmem:[%s219 + $0x58] sm:$0xff]
        %v267 = vld [vmem:[%s219 + $0x60] sm:$0xff]
        %v268 = vld [vmem:[%s219 + $0x68] sm:$0xff]
        %v269 = vld [vmem:[%s219 + $0x70] sm:$0xff]
        %v270 = vld [vmem:[%s219 + $0x78] sm:$0xff]
        %v271 = vld [vmem:[%s219 + $0x80] sm:$0xff]
        %v272 = vld [vmem:[%s219 + $0x88] sm:$0xff]
        %v273 = vld [vmem:[%s219 + $0x90] sm:$0xff]
        %v274 = vld [vmem:[%s219 + $0x98] sm:$0xff]
        %v275 = vld [vmem:[%s219 + $0xa0] sm:$0xff]
        %v276 = vld [vmem:[%s219 + $0xa8] sm:$0xff]
        %v277 = vld [vmem:[%s219 + $0xb0] sm:$0xff]
        %v278 = vld [vmem:[%s219 + $0xb8] sm:$0xff]
        %v279 = vld [vmem:[%s219 + $0xc0] sm:$0xff]
        %v280 = vld [vmem:[%s219 + $0xc8] sm:$0xff]
        %v281 = vld [vmem:[%s219 + $0xd0] sm:$0xff]
        %v282 = vld [vmem:[%s219 + $0xd8] sm:$0xff]
        %v283 = vld [vmem:[%s219 + $0xe0] sm:$0xff]
        %v284 = vld [vmem:[%s219 + $0xe8] sm:$0xff]
        %v285 = vld [vmem:[%s219 + $0xf0] sm:$0xff]
        %v286 = vld [vmem:[%s219 + $0xf8] sm:$0xff]
        %v287 = vld [vmem:[%s1] sm:$0xff]
        %v288 = vld [vmem:[%s1 + $0x8] sm:$0xff]
        %v289 = vld [vmem:[%s1 + $0x10] sm:$0xff]
        %v290 = vld [vmem:[%s1 + $0x18] sm:$0xff]
        %v291 = vld [vmem:[%s1 + $0x20] sm:$0xff]
        %v292 = vld [vmem:[%s1 + $0x28] sm:$0xff]
        %v293 = vld [vmem:[%s1 + $0x30] sm:$0xff]
        %v294 = vld [vmem:[%s1 + $0x38] sm:$0xff]
        %v295 = vld [vmem:[%s1 + $0x40] sm:$0xff]
        %v296 = vld [vmem:[%s1 + $0x48] sm:$0xff]
        %v297 = vld [vmem:[%s1 + $0x50] sm:$0xff]
        %v298 = vld [vmem:[%s1 + $0x58] sm:$0xff]
        %v299 = vld [vmem:[%s1 + $0x60] sm:$0xff]
        %v300 = vld [vmem:[%s1 + $0x68] sm:$0xff]
        %v301 = vld [vmem:[%s1 + $0x70] sm:$0xff]
        %v302 = vld [vmem:[%s1 + $0x78] sm:$0xff]
        %v303 = vld [vmem:[%s2] sm:$0x1]
        %v305 = vlaneseq
        %v306 = vshrl.u32 %v305, 7
        %v307 = vsub.s32 0, %v306
        %v308 = vrot.slane %v303, %v307
        %310 = vmatprep.subr.mxu0 0.0
        %311 = vmatpush1.msra.mxu0 %v287
        %312 = vmatprep.subr.mxu0 0.0
        %313 = vmatpush1.msra.mxu0 %v288
        %314 = vmatprep.subr.mxu0 0.0
        %315 = vmatpush1.msra.mxu0 %v289
        %316 = vmatprep.subr.mxu0 0.0
        %317 = vmatpush1.msra.mxu0 %v290
        %318 = vmatprep.subr.mxu0 0.0
        %319 = vmatpush1.msra.mxu0 %v291
        %320 = vmatprep.subr.mxu0 0.0
        %321 = vmatpush1.msra.mxu0 %v292
        %322 = vmatprep.subr.mxu0 0.0
        %323 = vmatpush1.msra.mxu0 %v293
        %324 = vmatprep.subr.mxu0 0.0
        %325 = vmatpush1.msra.mxu0 %v294
        %326 = vmatprep.subr.mxu0 0.0
        %327 = vmatpush1.msra.mxu0 %v295
        %328 = vmatprep.subr.mxu0 0.0
        %329 = vmatpush1.msra.mxu0 %v296
        %330 = vmatprep.subr.mxu0 0.0
        %331 = vmatpush1.msra.mxu0 %v297
        %332 = vmatprep.subr.mxu0 0.0
        %333 = vmatpush1.msra.mxu0 %v298
        %334 = vmatprep.subr.mxu0 0.0
        %335 = vmatpush1.msra.mxu0 %v299
        %336 = vmatprep.subr.mxu0 0.0
        %337 = vmatpush1.msra.mxu0 %v300
        %338 = vmatprep.subr.mxu0 0.0
        %339 = vmatpush1.msra.mxu0 %v301
        %340 = vmatprep.subr.mxu0 0.0
        %341 = vmatpush1.msra.mxu0 %v302
        %342 = vmatprep.subr.mxu0 0.0
        %343 = vmatpush1.msra.mxu0 0.0
        %344 = vmatprep.subr.mxu0 0.0
        %345 = vmatpush1.msra.mxu0 0.0
        %346 = vmatprep.subr.mxu0 0.0
        %347 = vmatpush1.msra.mxu0 0.0
        %348 = vmatprep.subr.mxu0 0.0
        %349 = vmatpush1.msra.mxu0 0.0
        %350 = vmatprep.subr.mxu0 0.0
        %351 = vmatpush1.msra.mxu0 0.0
        %352 = vmatprep.subr.mxu0 0.0
        %353 = vmatpush1.msra.mxu0 0.0
        %354 = vmatprep.subr.mxu0 0.0
        %355 = vmatpush1.msra.mxu0 0.0
        %356 = vmatprep.subr.mxu0 0.0
        %357 = vmatpush1.msra.mxu0 0.0
        %358 = vmatprep.subr.mxu0 0.0
        %359 = vmatpush1.msra.mxu0 0.0
        %360 = vmatprep.subr.mxu0 0.0
        %361 = vmatpush1.msra.mxu0 0.0
        %362 = vmatprep.subr.mxu0 0.0
        %363 = vmatpush1.msra.mxu0 0.0
        %364 = vmatprep.subr.mxu0 0.0
        %365 = vmatpush1.msra.mxu0 0.0
        %366 = vmatprep.subr.mxu0 0.0
        %367 = vmatpush1.msra.mxu0 0.0
        %368 = vmatprep.subr.mxu0 0.0
        %369 = vmatpush1.msra.mxu0 0.0
        %370 = vmatprep.subr.mxu0 0.0
        %371 = vmatpush1.msra.mxu0 0.0
        %372 = vmatprep.subr.mxu0 0.0
        %373 = vmatpush1.msra.mxu0 0.0
        %374 = vmatprep.mubr.f32.mxu0 0.0
        %375 = vmatmul.mubr.f32.gmra.mrb[0].mxu0 %v255
        %v376 = vpop.f32.mrb[0].mxu0
        %v377 = vadd.f32 %v308, %v376
        %v378 = vpop.f32.mrb[0].mxu0
        %379 = vmatprep.mubr.f32.mxu0 0.0
        %380 = vmatmul.mubr.f32.gmra.mrb[0].mxu0 %v256
        %v381 = vpop.f32.mrb[0].mxu0
        %v382 = vadd.f32 %v308, %v381
        %v383 = vpop.f32.mrb[0].mxu0
        %384 = vmatprep.mubr.f32.mxu0 0.0
        %385 = vmatmul.mubr.f32.gmra.mrb[0].mxu0 %v257
        %v386 = vpop.f32.mrb[0].mxu0
        %v387 = vadd.f32 %v308, %v386
        %v388 = vpop.f32.mrb[0].mxu0
        %389 = vmatprep.mubr.f32.mxu0 0.0
        %390 = vmatmul.mubr.f32.gmra.mrb[0].mxu0 %v258
        %v391 = vpop.f32.mrb[0].mxu0
        %v392 = vadd.f32 %v308, %v391
        %v393 = vpop.f32.mrb[0].mxu0
        %394 = vmatprep.mubr.f32.mxu0 0.0
        %395 = vmatmul.mubr.f32.gmra.mrb[0].mxu0 %v259
        %v396 = vpop.f32.mrb[0].mxu0
        %v397 = vadd.f32 %v308, %v396
        %v398 = vpop.f32.mrb[0].mxu0
        %399 = vmatprep.mubr.f32.mxu0 0.0
        %400 = vmatmul.mubr.f32.gmra.mrb[0].mxu0 %v260
        %v401 = vpop.f32.mrb[0].mxu0
        %v402 = vadd.f32 %v308, %v401
        %v403 = vpop.f32.mrb[0].mxu0
        %404 = vmatprep.mubr.f32.mxu0 0.0
        %405 = vmatmul.mubr.f32.gmra.mrb[0].mxu0 %v261
        %v406 = vpop.f32.mrb[0].mxu0
        %v407 = vadd.f32 %v308, %v406
        %v408 = vpop.f32.mrb[0].mxu0
        %409 = vmatprep.mubr.f32.mxu0 0.0
        %410 = vmatmul.mubr.f32.gmra.mrb[0].mxu0 %v262
        %v411 = vpop.f32.mrb[0].mxu0
        %v412 = vadd.f32 %v308, %v411
        %v413 = vpop.f32.mrb[0].mxu0
        %414 = vmatprep.mubr.f32.mxu0 0.0
        %415 = vmatmul.mubr.f32.gmra.mrb[0].mxu0 %v263
        %v416 = vpop.f32.mrb[0].mxu0
        %v417 = vadd.f32 %v308, %v416
        %v418 = vpop.f32.mrb[0].mxu0
        %419 = vmatprep.mubr.f32.mxu0 0.0
        %420 = vmatmul.mubr.f32.gmra.mrb[0].mxu0 %v264
        %v421 = vpop.f32.mrb[0].mxu0
        %v422 = vadd.f32 %v308, %v421
        %v423 = vpop.f32.mrb[0].mxu0
        %424 = vmatprep.mubr.f32.mxu0 0.0
        %425 = vmatmul.mubr.f32.gmra.mrb[0].mxu0 %v265
        %v426 = vpop.f32.mrb[0].mxu0
        %v427 = vadd.f32 %v308, %v426
        %v428 = vpop.f32.mrb[0].mxu0
        %429 = vmatprep.mubr.f32.mxu0 0.0
        %430 = vmatmul.mubr.f32.gmra.mrb[0].mxu0 %v266
        %v431 = vpop.f32.mrb[0].mxu0
        %v432 = vadd.f32 %v308, %v431
        %v433 = vpop.f32.mrb[0].mxu0
        %434 = vmatprep.mubr.f32.mxu0 0.0
        %435 = vmatmul.mubr.f32.gmra.mrb[0].mxu0 %v267
        %v436 = vpop.f32.mrb[0].mxu0
        %v437 = vadd.f32 %v308, %v436
        %v438 = vpop.f32.mrb[0].mxu0
        %439 = vmatprep.mubr.f32.mxu0 0.0
        %440 = vmatmul.mubr.f32.gmra.mrb[0].mxu0 %v268
        %v441 = vpop.f32.mrb[0].mxu0
        %v442 = vadd.f32 %v308, %v441
        %v443 = vpop.f32.mrb[0].mxu0
        %444 = vmatprep.mubr.f32.mxu0 0.0
        %445 = vmatmul.mubr.f32.gmra.mrb[0].mxu0 %v269
        %v446 = vpop.f32.mrb[0].mxu0
        %v447 = vadd.f32 %v308, %v446
        %v448 = vpop.f32.mrb[0].mxu0
        %449 = vmatprep.mubr.f32.mxu0 0.0
        %450 = vmatmul.mubr.f32.gmra.mrb[0].mxu0 %v270
        %v451 = vpop.f32.mrb[0].mxu0
        %v452 = vadd.f32 %v308, %v451
        %v453 = vpop.f32.mrb[0].mxu0
        %454 = vmatprep.mubr.f32.mxu0 0.0
        %455 = vmatmul.mubr.f32.gmra.mrb[0].mxu0 %v271
        %v456 = vpop.f32.mrb[0].mxu0
        %v457 = vadd.f32 %v308, %v456
        %v458 = vpop.f32.mrb[0].mxu0
        %459 = vmatprep.mubr.f32.mxu0 0.0
        %460 = vmatmul.mubr.f32.gmra.mrb[0].mxu0 %v272
        %v461 = vpop.f32.mrb[0].mxu0
        %v462 = vadd.f32 %v308, %v461
        %v463 = vpop.f32.mrb[0].mxu0
        %464 = vmatprep.mubr.f32.mxu0 0.0
        %465 = vmatmul.mubr.f32.gmra.mrb[0].mxu0 %v273
        %v466 = vpop.f32.mrb[0].mxu0
        %v467 = vadd.f32 %v308, %v466
        %v468 = vpop.f32.mrb[0].mxu0
        %469 = vmatprep.mubr.f32.mxu0 0.0
        %470 = vmatmul.mubr.f32.gmra.mrb[0].mxu0 %v274
        %v471 = vpop.f32.mrb[0].mxu0
        %v472 = vadd.f32 %v308, %v471
        %v473 = vpop.f32.mrb[0].mxu0
        %474 = vmatprep.mubr.f32.mxu0 0.0
        %475 = vmatmul.mubr.f32.gmra.mrb[0].mxu0 %v275
        %v476 = vpop.f32.mrb[0].mxu0
        %v477 = vadd.f32 %v308, %v476
        %v478 = vpop.f32.mrb[0].mxu0
        %479 = vmatprep.mubr.f32.mxu0 0.0
        %480 = vmatmul.mubr.f32.gmra.mrb[0].mxu0 %v276
        %v481 = vpop.f32.mrb[0].mxu0
        %v482 = vadd.f32 %v308, %v481
        %v483 = vpop.f32.mrb[0].mxu0
        %484 = vmatprep.mubr.f32.mxu0 0.0
        %485 = vmatmul.mubr.f32.gmra.mrb[0].mxu0 %v277
        %v486 = vpop.f32.mrb[0].mxu0
        %v487 = vadd.f32 %v308, %v486
        %v488 = vpop.f32.mrb[0].mxu0
        %489 = vmatprep.mubr.f32.mxu0 0.0
        %490 = vmatmul.mubr.f32.gmra.mrb[0].mxu0 %v278
        %v491 = vpop.f32.mrb[0].mxu0
        %v492 = vadd.f32 %v308, %v491
        %v493 = vpop.f32.mrb[0].mxu0
        %494 = vmatprep.mubr.f32.mxu0 0.0
        %495 = vmatmul.mubr.f32.gmra.mrb[0].mxu0 %v279
        %v496 = vpop.f32.mrb[0].mxu0
        %v497 = vadd.f32 %v308, %v496
        %v498 = vpop.f32.mrb[0].mxu0
        %499 = vmatprep.mubr.f32.mxu0 0.0
        %500 = vmatmul.mubr.f32.gmra.mrb[0].mxu0 %v280
        %v501 = vpop.f32.mrb[0].mxu0
        %v502 = vadd.f32 %v308, %v501
        %v503 = vpop.f32.mrb[0].mxu0
        %504 = vmatprep.mubr.f32.mxu0 0.0
        %505 = vmatmul.mubr.f32.gmra.mrb[0].mxu0 %v281
        %v506 = vpop.f32.mrb[0].mxu0
        %v507 = vadd.f32 %v308, %v506
        %v508 = vpop.f32.mrb[0].mxu0
        %509 = vmatprep.mubr.f32.mxu0 0.0
        %510 = vmatmul.mubr.f32.gmra.mrb[0].mxu0 %v282
        %v511 = vpop.f32.mrb[0].mxu0
        %v512 = vadd.f32 %v308, %v511
        %v513 = vpop.f32.mrb[0].mxu0
        %514 = vmatprep.mubr.f32.mxu0 0.0
        %515 = vmatmul.mubr.f32.gmra.mrb[0].mxu0 %v283
        %v516 = vpop.f32.mrb[0].mxu0
        %v517 = vadd.f32 %v308, %v516
        %v518 = vpop.f32.mrb[0].mxu0
        %519 = vmatprep.mubr.f32.mxu0 0.0
        %520 = vmatmul.mubr.f32.gmra.mrb[0].mxu0 %v284
        %v521 = vpop.f32.mrb[0].mxu0
        %v522 = vadd.f32 %v308, %v521
        %v523 = vpop.f32.mrb[0].mxu0
        %524 = vmatprep.mubr.f32.mxu0 0.0
        %525 = vmatmul.mubr.f32.gmra.mrb[0].mxu0 %v285
        %v526 = vpop.f32.mrb[0].mxu0
        %v527 = vadd.f32 %v308, %v526
        %v528 = vpop.f32.mrb[0].mxu0
        %529 = vmatprep.mubr.f32.mxu0 0.0
        %530 = vmatmul.mubr.f32.gmra.mrb[0].mxu0 %v286
        %v531 = vpop.f32.mrb[0].mxu0
        %v532 = vadd.f32 %v308, %v531
        %v533 = vpop.f32.mrb[0].mxu0
        %534 = vdwg.mxu0
        %v535 = vmax.f32 %v377, 0.0
        %v536 = vmax.f32 %v382, 0.0
        %v537 = vmax.f32 %v387, 0.0
        %v538 = vmax.f32 %v392, 0.0
        %v539 = vmax.f32 %v397, 0.0
        %v540 = vmax.f32 %v402, 0.0
        %v541 = vmax.f32 %v407, 0.0
        %v542 = vmax.f32 %v412, 0.0
        %v543 = vmax.f32 %v417, 0.0
        %v544 = vmax.f32 %v422, 0.0
        %v545 = vmax.f32 %v427, 0.0
        %v546 = vmax.f32 %v432, 0.0
        %v547 = vmax.f32 %v437, 0.0
        %v548 = vmax.f32 %v442, 0.0
        %v549 = vmax.f32 %v447, 0.0
        %v550 = vmax.f32 %v452, 0.0
        %v551 = vmax.f32 %v457, 0.0
        %v552 = vmax.f32 %v462, 0.0
        %v553 = vmax.f32 %v467, 0.0
        %v554 = vmax.f32 %v472, 0.0
        %v555 = vmax.f32 %v477, 0.0
        %v556 = vmax.f32 %v482, 0.0
        %v557 = vmax.f32 %v487, 0.0
        %v558 = vmax.f32 %v492, 0.0
        %v559 = vmax.f32 %v497, 0.0
        %v560 = vmax.f32 %v502, 0.0
        %v561 = vmax.f32 %v507, 0.0
        %v562 = vmax.f32 %v512, 0.0
        %v563 = vmax.f32 %v517, 0.0
        %v564 = vmax.f32 %v522, 0.0
        %v565 = vmax.f32 %v527, 0.0
        %v566 = vmax.f32 %v532, 0.0
        %v567 = vld [vmem:[%s3] sm:$0xff]
        %v568 = vld [vmem:[%s3 + $0x8] sm:$0xff]
        %v569 = vld [vmem:[%s3 + $0x10] sm:$0xff]
        %v570 = vld [vmem:[%s3 + $0x18] sm:$0xff]
        %v571 = vld [vmem:[%s3 + $0x20] sm:$0xff]
        %v572 = vld [vmem:[%s3 + $0x28] sm:$0xff]
        %v573 = vld [vmem:[%s3 + $0x30] sm:$0xff]
        %v574 = vld [vmem:[%s3 + $0x38] sm:$0xff]
        %v575 = vld [vmem:[%s3 + $0x40] sm:$0xff]
        %v576 = vld [vmem:[%s3 + $0x48] sm:$0xff]
        %v577 = vld [vmem:[%s3 + $0x50] sm:$0xff]
        %v578 = vld [vmem:[%s3 + $0x58] sm:$0xff]
        %v579 = vld [vmem:[%s3 + $0x60] sm:$0xff]
        %v580 = vld [vmem:[%s3 + $0x68] sm:$0xff]
        %v581 = vld [vmem:[%s3 + $0x70] sm:$0xff]
        %v582 = vld [vmem:[%s3 + $0x78] sm:$0xff]
        %v583 = vld [vmem:[%s4] sm:$0x1]
        %v585 = vlaneseq
        %v586 = vshrl.u32 %v585, 7
        %v587 = vsub.s32 0, %v586
        %v588 = vrot.slane %v583, %v587
        %590 = vmatprep.subr.mxu0 0.0
        %591 = vmatpush1.msra.mxu0 %v567
        %592 = vmatprep.subr.mxu0 0.0
        %593 = vmatpush1.msra.mxu0 %v568
        %594 = vmatprep.subr.mxu0 0.0
        %595 = vmatpush1.msra.mxu0 %v569
        %596 = vmatprep.subr.mxu0 0.0
        %597 = vmatpush1.msra.mxu0 %v570
        %598 = vmatprep.subr.mxu0 0.0
        %599 = vmatpush1.msra.mxu0 %v571
        %600 = vmatprep.subr.mxu0 0.0
        %601 = vmatpush1.msra.mxu0 %v572
        %602 = vmatprep.subr.mxu0 0.0
        %603 = vmatpush1.msra.mxu0 %v573
        %604 = vmatprep.subr.mxu0 0.0
        %605 = vmatpush1.msra.mxu0 %v574
        %606 = vmatprep.subr.mxu0 0.0
        %607 = vmatpush1.msra.mxu0 %v575
        %608 = vmatprep.subr.mxu0 0.0
        %609 = vmatpush1.msra.mxu0 %v576
        %610 = vmatprep.subr.mxu0 0.0
        %611 = vmatpush1.msra.mxu0 %v577
        %612 = vmatprep.subr.mxu0 0.0
        %613 = vmatpush1.msra.mxu0 %v578
        %614 = vmatprep.subr.mxu0 0.0
        %615 = vmatpush1.msra.mxu0 %v579
        %616 = vmatprep.subr.mxu0 0.0
        %617 = vmatpush1.msra.mxu0 %v580
        %618 = vmatprep.subr.mxu0 0.0
        %619 = vmatpush1.msra.mxu0 %v581
        %620 = vmatprep.subr.mxu0 0.0
        %621 = vmatpush1.msra.mxu0 %v582
        %622 = vmatprep.subr.mxu0 0.0
        %623 = vmatpush1.msra.mxu0 0.0
        %624 = vmatprep.subr.mxu0 0.0
        %625 = vmatpush1.msra.mxu0 0.0
        %626 = vmatprep.subr.mxu0 0.0
        %627 = vmatpush1.msra.mxu0 0.0
        %628 = vmatprep.subr.mxu0 0.0
        %629 = vmatpush1.msra.mxu0 0.0
        %630 = vmatprep.subr.mxu0 0.0
        %631 = vmatpush1.msra.mxu0 0.0
        %632 = vmatprep.subr.mxu0 0.0
        %633 = vmatpush1.msra.mxu0 0.0
        %634 = vmatprep.subr.mxu0 0.0
        %635 = vmatpush1.msra.mxu0 0.0
        %636 = vmatprep.subr.mxu0 0.0
        %637 = vmatpush1.msra.mxu0 0.0
        %638 = vmatprep.subr.mxu0 0.0
        %639 = vmatpush1.msra.mxu0 0.0
        %640 = vmatprep.subr.mxu0 0.0
        %641 = vmatpush1.msra.mxu0 0.0
        %642 = vmatprep.subr.mxu0 0.0
        %643 = vmatpush1.msra.mxu0 0.0
        %644 = vmatprep.subr.mxu0 0.0
        %645 = vmatpush1.msra.mxu0 0.0
        %646 = vmatprep.subr.mxu0 0.0
        %647 = vmatpush1.msra.mxu0 0.0
        %648 = vmatprep.subr.mxu0 0.0
        %649 = vmatpush1.msra.mxu0 0.0
        %650 = vmatprep.subr.mxu0 0.0
        %651 = vmatpush1.msra.mxu0 0.0
        %652 = vmatprep.subr.mxu0 0.0
        %653 = vmatpush1.msra.mxu0 0.0
        %654 = vmatprep.mubr.f32.mxu0 0.0
        %655 = vmatmul.mubr.f32.gmra.mrb[0].mxu0 %v535
        %v656 = vpop.f32.mrb[0].mxu0
        %v657 = vadd.f32 %v588, %v656
        %v658 = vpop.f32.mrb[0].mxu0
        %659 = vmatprep.mubr.f32.mxu0 0.0
        %660 = vmatmul.mubr.f32.gmra.mrb[0].mxu0 %v536
        %v661 = vpop.f32.mrb[0].mxu0
        %v662 = vadd.f32 %v588, %v661
        %v663 = vpop.f32.mrb[0].mxu0
        %664 = vmatprep.mubr.f32.mxu0 0.0
        %665 = vmatmul.mubr.f32.gmra.mrb[0].mxu0 %v537
        %v666 = vpop.f32.mrb[0].mxu0
        %v667 = vadd.f32 %v588, %v666
        %v668 = vpop.f32.mrb[0].mxu0
        %669 = vmatprep.mubr.f32.mxu0 0.0
        %670 = vmatmul.mubr.f32.gmra.mrb[0].mxu0 %v538
        %v671 = vpop.f32.mrb[0].mxu0
        %v672 = vadd.f32 %v588, %v671
        %v673 = vpop.f32.mrb[0].mxu0
        %674 = vmatprep.mubr.f32.mxu0 0.0
        %675 = vmatmul.mubr.f32.gmra.mrb[0].mxu0 %v539
        %v676 = vpop.f32.mrb[0].mxu0
        %v677 = vadd.f32 %v588, %v676
        %v678 = vpop.f32.mrb[0].mxu0
        %679 = vmatprep.mubr.f32.mxu0 0.0
        %680 = vmatmul.mubr.f32.gmra.mrb[0].mxu0 %v540
        %v681 = vpop.f32.mrb[0].mxu0
        %v682 = vadd.f32 %v588, %v681
        %v683 = vpop.f32.mrb[0].mxu0
        %684 = vmatprep.mubr.f32.mxu0 0.0
        %685 = vmatmul.mubr.f32.gmra.mrb[0].mxu0 %v541
        %v686 = vpop.f32.mrb[0].mxu0
        %v687 = vadd.f32 %v588, %v686
        %v688 = vpop.f32.mrb[0].mxu0
        %689 = vmatprep.mubr.f32.mxu0 0.0
        %690 = vmatmul.mubr.f32.gmra.mrb[0].mxu0 %v542
        %v691 = vpop.f32.mrb[0].mxu0
        %v692 = vadd.f32 %v588, %v691
        %v693 = vpop.f32.mrb[0].mxu0
        %694 = vmatprep.mubr.f32.mxu0 0.0
        %695 = vmatmul.mubr.f32.gmra.mrb[0].mxu0 %v543
        %v696 = vpop.f32.mrb[0].mxu0
        %v697 = vadd.f32 %v588, %v696
        %v698 = vpop.f32.mrb[0].mxu0
        %699 = vmatprep.mubr.f32.mxu0 0.0
        %700 = vmatmul.mubr.f32.gmra.mrb[0].mxu0 %v544
        %v701 = vpop.f32.mrb[0].mxu0
        %v702 = vadd.f32 %v588, %v701
        %v703 = vpop.f32.mrb[0].mxu0
        %704 = vmatprep.mubr.f32.mxu0 0.0
        %705 = vmatmul.mubr.f32.gmra.mrb[0].mxu0 %v545
        %v706 = vpop.f32.mrb[0].mxu0
        %v707 = vadd.f32 %v588, %v706
        %v708 = vpop.f32.mrb[0].mxu0
        %709 = vmatprep.mubr.f32.mxu0 0.0
        %710 = vmatmul.mubr.f32.gmra.mrb[0].mxu0 %v546
        %v711 = vpop.f32.mrb[0].mxu0
        %v712 = vadd.f32 %v588, %v711
        %v713 = vpop.f32.mrb[0].mxu0
        %714 = vmatprep.mubr.f32.mxu0 0.0
        %715 = vmatmul.mubr.f32.gmra.mrb[0].mxu0 %v547
        %v716 = vpop.f32.mrb[0].mxu0
        %v717 = vadd.f32 %v588, %v716
        %v718 = vpop.f32.mrb[0].mxu0
        %719 = vmatprep.mubr.f32.mxu0 0.0
        %720 = vmatmul.mubr.f32.gmra.mrb[0].mxu0 %v548
        %v721 = vpop.f32.mrb[0].mxu0
        %v722 = vadd.f32 %v588, %v721
        %v723 = vpop.f32.mrb[0].mxu0
        %724 = vmatprep.mubr.f32.mxu0 0.0
        %725 = vmatmul.mubr.f32.gmra.mrb[0].mxu0 %v549
        %v726 = vpop.f32.mrb[0].mxu0
        %v727 = vadd.f32 %v588, %v726
        %v728 = vpop.f32.mrb[0].mxu0
        %729 = vmatprep.mubr.f32.mxu0 0.0
        %730 = vmatmul.mubr.f32.gmra.mrb[0].mxu0 %v550
        %v731 = vpop.f32.mrb[0].mxu0
        %v732 = vadd.f32 %v588, %v731
        %v733 = vpop.f32.mrb[0].mxu0
        %734 = vmatprep.mubr.f32.mxu0 0.0
        %735 = vmatmul.mubr.f32.gmra.mrb[0].mxu0 %v551
        %v736 = vpop.f32.mrb[0].mxu0
        %v737 = vadd.f32 %v588, %v736
        %v738 = vpop.f32.mrb[0].mxu0
        %739 = vmatprep.mubr.f32.mxu0 0.0
        %740 = vmatmul.mubr.f32.gmra.mrb[0].mxu0 %v552
        %v741 = vpop.f32.mrb[0].mxu0
        %v742 = vadd.f32 %v588, %v741
        %v743 = vpop.f32.mrb[0].mxu0
        %744 = vmatprep.mubr.f32.mxu0 0.0
        %745 = vmatmul.mubr.f32.gmra.mrb[0].mxu0 %v553
        %v746 = vpop.f32.mrb[0].mxu0
        %v747 = vadd.f32 %v588, %v746
        %v748 = vpop.f32.mrb[0].mxu0
        %749 = vmatprep.mubr.f32.mxu0 0.0
        %750 = vmatmul.mubr.f32.gmra.mrb[0].mxu0 %v554
        %v751 = vpop.f32.mrb[0].mxu0
        %v752 = vadd.f32 %v588, %v751
        %v753 = vpop.f32.mrb[0].mxu0
        %754 = vmatprep.mubr.f32.mxu0 0.0
        %755 = vmatmul.mubr.f32.gmra.mrb[0].mxu0 %v555
        %v756 = vpop.f32.mrb[0].mxu0
        %v757 = vadd.f32 %v588, %v756
        %v758 = vpop.f32.mrb[0].mxu0
        %759 = vmatprep.mubr.f32.mxu0 0.0
        %760 = vmatmul.mubr.f32.gmra.mrb[0].mxu0 %v556
        %v761 = vpop.f32.mrb[0].mxu0
        %v762 = vadd.f32 %v588, %v761
        %v763 = vpop.f32.mrb[0].mxu0
        %764 = vmatprep.mubr.f32.mxu0 0.0
        %765 = vmatmul.mubr.f32.gmra.mrb[0].mxu0 %v557
        %v766 = vpop.f32.mrb[0].mxu0
        %v767 = vadd.f32 %v588, %v766
        %v768 = vpop.f32.mrb[0].mxu0
        %769 = vmatprep.mubr.f32.mxu0 0.0
        %770 = vmatmul.mubr.f32.gmra.mrb[0].mxu0 %v558
        %v771 = vpop.f32.mrb[0].mxu0
        %v772 = vadd.f32 %v588, %v771
        %v773 = vpop.f32.mrb[0].mxu0
        %774 = vmatprep.mubr.f32.mxu0 0.0
        %775 = vmatmul.mubr.f32.gmra.mrb[0].mxu0 %v559
        %v776 = vpop.f32.mrb[0].mxu0
        %v777 = vadd.f32 %v588, %v776
        %v778 = vpop.f32.mrb[0].mxu0
        %779 = vmatprep.mubr.f32.mxu0 0.0
        %780 = vmatmul.mubr.f32.gmra.mrb[0].mxu0 %v560
        %v781 = vpop.f32.mrb[0].mxu0
        %v782 = vadd.f32 %v588, %v781
        %v783 = vpop.f32.mrb[0].mxu0
        %784 = vmatprep.mubr.f32.mxu0 0.0
        %785 = vmatmul.mubr.f32.gmra.mrb[0].mxu0 %v561
        %v786 = vpop.f32.mrb[0].mxu0
        %v787 = vadd.f32 %v588, %v786
        %v788 = vpop.f32.mrb[0].mxu0
        %789 = vmatprep.mubr.f32.mxu0 0.0
        %790 = vmatmul.mubr.f32.gmra.mrb[0].mxu0 %v562
        %v791 = vpop.f32.mrb[0].mxu0
        %v792 = vadd.f32 %v588, %v791
        %v793 = vpop.f32.mrb[0].mxu0
        %794 = vmatprep.mubr.f32.mxu0 0.0
        %795 = vmatmul.mubr.f32.gmra.mrb[0].mxu0 %v563
        %v796 = vpop.f32.mrb[0].mxu0
        %v797 = vadd.f32 %v588, %v796
        %v798 = vpop.f32.mrb[0].mxu0
        %799 = vmatprep.mubr.f32.mxu0 0.0
        %800 = vmatmul.mubr.f32.gmra.mrb[0].mxu0 %v564
        %v801 = vpop.f32.mrb[0].mxu0
        %v802 = vadd.f32 %v588, %v801
        %v803 = vpop.f32.mrb[0].mxu0
        %804 = vmatprep.mubr.f32.mxu0 0.0
        %805 = vmatmul.mubr.f32.gmra.mrb[0].mxu0 %v565
        %v806 = vpop.f32.mrb[0].mxu0
        %v807 = vadd.f32 %v588, %v806
        %v808 = vpop.f32.mrb[0].mxu0
        %809 = vmatprep.mubr.f32.mxu0 0.0
        %810 = vmatmul.mubr.f32.gmra.mrb[0].mxu0 %v566
        %v811 = vpop.f32.mrb[0].mxu0
        %v812 = vadd.f32 %v588, %v811
        %v813 = vpop.f32.mrb[0].mxu0
        %814 = vdwg.mxu0
        %vm815 = vcmask 15360
        %816 = vst.msk [vmem:[%s244] sm:$0xff] %vm815, %v657
        %817 = vst.msk [vmem:[%s244 + $0x8] sm:$0xff] %vm815, %v662
        %818 = vst.msk [vmem:[%s244 + $0x10] sm:$0xff] %vm815, %v667
        %819 = vst.msk [vmem:[%s244 + $0x18] sm:$0xff] %vm815, %v672
        %820 = vst.msk [vmem:[%s244 + $0x20] sm:$0xff] %vm815, %v677
        %821 = vst.msk [vmem:[%s244 + $0x28] sm:$0xff] %vm815, %v682
        %822 = vst.msk [vmem:[%s244 + $0x30] sm:$0xff] %vm815, %v687
        %823 = vst.msk [vmem:[%s244 + $0x38] sm:$0xff] %vm815, %v692
        %824 = vst.msk [vmem:[%s244 + $0x40] sm:$0xff] %vm815, %v697
        %825 = vst.msk [vmem:[%s244 + $0x48] sm:$0xff] %vm815, %v702
        %826 = vst.msk [vmem:[%s244 + $0x50] sm:$0xff] %vm815, %v707
        %827 = vst.msk [vmem:[%s244 + $0x58] sm:$0xff] %vm815, %v712
        %828 = vst.msk [vmem:[%s244 + $0x60] sm:$0xff] %vm815, %v717
        %829 = vst.msk [vmem:[%s244 + $0x68] sm:$0xff] %vm815, %v722
        %830 = vst.msk [vmem:[%s244 + $0x70] sm:$0xff] %vm815, %v727
        %831 = vst.msk [vmem:[%s244 + $0x78] sm:$0xff] %vm815, %v732
        %832 = vst.msk [vmem:[%s244 + $0x80] sm:$0xff] %vm815, %v737
        %833 = vst.msk [vmem:[%s244 + $0x88] sm:$0xff] %vm815, %v742
        %834 = vst.msk [vmem:[%s244 + $0x90] sm:$0xff] %vm815, %v747
        %835 = vst.msk [vmem:[%s244 + $0x98] sm:$0xff] %vm815, %v752
        %836 = vst.msk [vmem:[%s244 + $0xa0] sm:$0xff] %vm815, %v757
        %837 = vst.msk [vmem:[%s244 + $0xa8] sm:$0xff] %vm815, %v762
        %838 = vst.msk [vmem:[%s244 + $0xb0] sm:$0xff] %vm815, %v767
        %839 = vst.msk [vmem:[%s244 + $0xb8] sm:$0xff] %vm815, %v772
        %840 = vst.msk [vmem:[%s244 + $0xc0] sm:$0xff] %vm815, %v777
        %841 = vst.msk [vmem:[%s244 + $0xc8] sm:$0xff] %vm815, %v782
        %842 = vst.msk [vmem:[%s244 + $0xd0] sm:$0xff] %vm815, %v787
        %843 = vst.msk [vmem:[%s244 + $0xd8] sm:$0xff] %vm815, %v792
        %844 = vst.msk [vmem:[%s244 + $0xe0] sm:$0xff] %vm815, %v797
        %845 = vst.msk [vmem:[%s244 + $0xe8] sm:$0xff] %vm815, %v802
        %846 = vst.msk [vmem:[%s244 + $0xf0] sm:$0xff] %vm815, %v807
        %847 = vst.msk [vmem:[%s244 + $0xf8] sm:$0xff] %vm815, %v812
        %s848 = sand.u32 %s137, 1
        %s849 = sand.u32 %s137, 1
        %s850 = smul.addr %s849, 256
        %s851 = scalar_lea.vmem [#allocation4], %s850
        // Predicated region
        $region45: #{decoder_forward.1} parent=39 // pred_check
          %p852 = pneg %p147
        $region46: #{decoder_forward.1} parent=39 // pred_check_branch
          %854 = sbr.rel (%p852) target = $region48
        $region47: #{decoder_forward.1} parent=39 // pred_region
          %s855 = smul.u32 32, %s19
          %s856 = ssub.s32 125, %s855
          %p857 = scmp.lt.s32.totalorder %s856, 32
          %s858 = scalar_select %p857, %s856, 32
          %s859 = smul.u32 128, %s858
          %p860 = scmp.ne.s32.totalorder 0, %s859
          %s861 = smul.addr %s855, 8
          %s862 = scalar_lea.vmem %s5, %s861
          // Predicated region
          $region49: #{decoder_forward.1} parent=47 // pred_check
            %p863 = pneg %p860
          $region50: #{decoder_forward.1} parent=47 // pred_check_branch
            %865 = sbr.rel (%p863) target = $region52
          $region51: #{decoder_forward.1} parent=47 // pred_region
            // Predicated region
            $region53: #{decoder_forward.1} parent=51 // pred_check
              _
            $region54: #{decoder_forward.1} parent=51 // pred_check_branch
              %867 = sbr.rel (0) target = $region56
            $region55: #{decoder_forward.1} parent=51 // pred_region
              // Predicated region
              $region75: #{decoder_forward.1} parent=55 // pred_check
                _
              $region76: #{decoder_forward.1} parent=55 // pred_check_branch
                %978 = sbr.rel (0) target = $region78
              $region77: #{decoder_forward.1} parent=55 // pred_region
                %s979 = sshrl.u32 %s858, 5
                // While loop
                $region79: #{decoder_forward.1} parent=77 // loop_pre_header
                  _
                $region80: #{decoder_forward.1} parent=77 // loop_header
                  %s981 = sphi 0, %s983
                  %p982 = scmp.ge.s32.totalorder %s981, %s979
                  %s986 = sphi 0, %s1055
                  %s987 = sphi %s851, %s1058
                  %s988 = sphi %s862, %s1059
                $region81: #{decoder_forward.1} parent=77 // loop_header_branch
                  %985 = sbr.rel (%p982) target = $region85
                $region82: #{decoder_forward.1} parent=77 // loop_body
                  %v989 = vld [vmem:[%s987] sm:$0xff]
                  %990 = vst [vmem:[%s988] sm:$0xff] %v989
                  %v991 = vld [vmem:[%s987 + $0x8] sm:$0xff]
                  %992 = vst [vmem:[%s988 + $0x8] sm:$0xff] %v991
                  %v993 = vld [vmem:[%s987 + $0x10] sm:$0xff]
                  %994 = vst [vmem:[%s988 + $0x10] sm:$0xff] %v993
                  %v995 = vld [vmem:[%s987 + $0x18] sm:$0xff]
                  %996 = vst [vmem:[%s988 + $0x18] sm:$0xff] %v995
                  %v997 = vld [vmem:[%s987 + $0x20] sm:$0xff]
                  %998 = vst [vmem:[%s988 + $0x20] sm:$0xff] %v997
                  %v999 = vld [vmem:[%s987 + $0x28] sm:$0xff]
                  %1000 = vst [vmem:[%s988 + $0x28] sm:$0xff] %v999
                  %v1001 = vld [vmem:[%s987 + $0x30] sm:$0xff]
                  %1002 = vst [vmem:[%s988 + $0x30] sm:$0xff] %v1001
                  %v1003 = vld [vmem:[%s987 + $0x38] sm:$0xff]
                  %1004 = vst [vmem:[%s988 + $0x38] sm:$0xff] %v1003
                  %v1005 = vld [vmem:[%s987 + $0x40] sm:$0xff]
                  %1006 = vst [vmem:[%s988 + $0x40] sm:$0xff] %v1005
                  %v1007 = vld [vmem:[%s987 + $0x48] sm:$0xff]
                  %1008 = vst [vmem:[%s988 + $0x48] sm:$0xff] %v1007
                  %v1009 = vld [vmem:[%s987 + $0x50] sm:$0xff]
                  %1010 = vst [vmem:[%s988 + $0x50] sm:$0xff] %v1009
                  %v1011 = vld [vmem:[%s987 + $0x58] sm:$0xff]
                  %1012 = vst [vmem:[%s988 + $0x58] sm:$0xff] %v1011
                  %v1013 = vld [vmem:[%s987 + $0x60] sm:$0xff]
                  %1014 = vst [vmem:[%s988 + $0x60] sm:$0xff] %v1013
                  %v1015 = vld [vmem:[%s987 + $0x68] sm:$0xff]
                  %1016 = vst [vmem:[%s988 + $0x68] sm:$0xff] %v1015
                  %v1017 = vld [vmem:[%s987 + $0x70] sm:$0xff]
                  %1018 = vst [vmem:[%s988 + $0x70] sm:$0xff] %v1017
                  %v1019 = vld [vmem:[%s987 + $0x78] sm:$0xff]
                  %1020 = vst [vmem:[%s988 + $0x78] sm:$0xff] %v1019
                  %v1021 = vld [vmem:[%s987 + $0x80] sm:$0xff]
                  %1022 = vst [vmem:[%s988 + $0x80] sm:$0xff] %v1021
                  %v1023 = vld [vmem:[%s987 + $0x88] sm:$0xff]
                  %1024 = vst [vmem:[%s988 + $0x88] sm:$0xff] %v1023
                  %v1025 = vld [vmem:[%s987 + $0x90] sm:$0xff]
                  %1026 = vst [vmem:[%s988 + $0x90] sm:$0xff] %v1025
                  %v1027 = vld [vmem:[%s987 + $0x98] sm:$0xff]
                  %1028 = vst [vmem:[%s988 + $0x98] sm:$0xff] %v1027
                  %v1029 = vld [vmem:[%s987 + $0xa0] sm:$0xff]
                  %1030 = vst [vmem:[%s988 + $0xa0] sm:$0xff] %v1029
                  %v1031 = vld [vmem:[%s987 + $0xa8] sm:$0xff]
                  %1032 = vst [vmem:[%s988 + $0xa8] sm:$0xff] %v1031
                  %v1033 = vld [vmem:[%s987 + $0xb0] sm:$0xff]
                  %1034 = vst [vmem:[%s988 + $0xb0] sm:$0xff] %v1033
                  %v1035 = vld [vmem:[%s987 + $0xb8] sm:$0xff]
                  %1036 = vst [vmem:[%s988 + $0xb8] sm:$0xff] %v1035
                  %v1037 = vld [vmem:[%s987 + $0xc0] sm:$0xff]
                  %1038 = vst [vmem:[%s988 + $0xc0] sm:$0xff] %v1037
                  %v1039 = vld [vmem:[%s987 + $0xc8] sm:$0xff]
                  %1040 = vst [vmem:[%s988 + $0xc8] sm:$0xff] %v1039
                  %v1041 = vld [vmem:[%s987 + $0xd0] sm:$0xff]
                  %1042 = vst [vmem:[%s988 + $0xd0] sm:$0xff] %v1041
                  %v1043 = vld [vmem:[%s987 + $0xd8] sm:$0xff]
                  %1044 = vst [vmem:[%s988 + $0xd8] sm:$0xff] %v1043
                  %v1045 = vld [vmem:[%s987 + $0xe0] sm:$0xff]
                  %1046 = vst [vmem:[%s988 + $0xe0] sm:$0xff] %v1045
                  %v1047 = vld [vmem:[%s987 + $0xe8] sm:$0xff]
                  %1048 = vst [vmem:[%s988 + $0xe8] sm:$0xff] %v1047
                  %v1049 = vld [vmem:[%s987 + $0xf0] sm:$0xff]
                  %1050 = vst [vmem:[%s988 + $0xf0] sm:$0xff] %v1049
                  %v1051 = vld [vmem:[%s987 + $0xf8] sm:$0xff]
                  %1052 = vst [vmem:[%s988 + $0xf8] sm:$0xff] %v1051
                  %s1053 = sadd.s32 1, %s986
                  %p1054 = scmp.ge.s32.totalorder %s1053, %s979
                  %s1055 = scalar_select %p1054, 0, %s1053
                  %s1056 = smul.u32 %s1055, 256
                  %s1057 = smul.u32 %s1055, 256
                  %s1058 = scalar_lea.vmem %s851, %s1056 [#allocation4]
                  %s1059 = scalar_lea.vmem %s862, %s1057
                $region83: #{decoder_forward.1} parent=77 // loop_footer
                  %s983 = sadd.s32 %s981, 1
                $region84: #{decoder_forward.1} parent=77 // loop_footer_branch
                  %980 = sbr.rel target = $region80
                $region85: #{decoder_forward.1} parent=77 // loop_exit
                  _
                %s1060 = sshrl.u32 %s858, 5
                %s1061 = sand.u32 %s858, 31
                %s1062 = smul.u32 %s1060, 32
                %s1063 = smul.u32 8, %s1062
                %s1064 = scalar_lea.vmem %s851, %s1063 [#allocation4]
                %s1065 = smul.u32 8, %s1062
                %s1066 = scalar_lea.vmem %s862, %s1065
                // While loop
                $region86: #{decoder_forward.1} parent=77 // loop_pre_header
                  _
                $region87: #{decoder_forward.1} parent=77 // loop_header
                  %s1068 = sphi 0, %s1070
                  %p1069 = scmp.ge.s32.totalorder %s1068, %s1061
                  %s1073 = sphi 0, %s1080
                  %s1074 = sphi %s1064, %s1083
                  %s1075 = sphi %s1066, %s1084
                $region88: #{decoder_forward.1} parent=77 // loop_header_branch
                  %1072 = sbr.rel (%p1069) target = $region92
                $region89: #{decoder_forward.1} parent=77 // loop_body
                  %v1076 = vld [vmem:[%s1074] sm:$0xff]
                  %1077 = vst [vmem:[%s1075] sm:$0xff] %v1076
                  %s1078 = sadd.s32 1, %s1073
                  %p1079 = scmp.ge.s32.totalorder %s1078, %s1061
                  %s1080 = scalar_select %p1079, 0, %s1078
                  %s1081 = smul.u32 %s1080, 8
                  %s1082 = smul.u32 %s1080, 8
                  %s1083 = scalar_lea.vmem %s1064, %s1081 [#allocation4]
                  %s1084 = scalar_lea.vmem %s1066, %s1082
                $region90: #{decoder_forward.1} parent=77 // loop_footer
                  %s1070 = sadd.s32 %s1068, 1
                $region91: #{decoder_forward.1} parent=77 // loop_footer_branch
                  %1067 = sbr.rel target = $region87
                $region92: #{decoder_forward.1} parent=77 // loop_exit
                  _
              $region78: #{decoder_forward.1} parent=55 // pred_fallthru
                _
              // Predicated region
              $region93: #{decoder_forward.1} parent=55 // pred_check
                _
              $region94: #{decoder_forward.1} parent=55 // pred_check_branch
                %1086 = sbr.rel target = $region96
              $region95: #{decoder_forward.1} parent=55 // pred_region
                _
              $region96: #{decoder_forward.1} parent=55 // pred_fallthru
                _
            $region56: #{decoder_forward.1} parent=51 // pred_fallthru
              _
            // Predicated region
            $region57: #{decoder_forward.1} parent=51 // pred_check
              _
            $region58: #{decoder_forward.1} parent=51 // pred_check_branch
              %869 = sbr.rel target = $region60
            $region59: #{decoder_forward.1} parent=51 // pred_region
              %s871 = sshrl.u32 %s858, 5
              // While loop
              $region61: #{decoder_forward.1} parent=59 // loop_pre_header
                _
              $region62: #{decoder_forward.1} parent=59 // loop_header
                %s873 = sphi 0, %s875
                %p874 = scmp.ge.s32.totalorder %s873, %s871
                %s878 = sphi 0, %s947
                %s879 = sphi %s851, %s950
                %s880 = sphi %s862, %s951
              $region63: #{decoder_forward.1} parent=59 // loop_header_branch
                %877 = sbr.rel (%p874) target = $region67
              $region64: #{decoder_forward.1} parent=59 // loop_body
                %v881 = vld [vmem:[%s879] sm:$0xff]
                %882 = vst [vmem:[%s880] sm:$0xff] %v881
                %v883 = vld [vmem:[%s879 + $0x8] sm:$0xff]
                %884 = vst [vmem:[%s880 + $0x8] sm:$0xff] %v883
                %v885 = vld [vmem:[%s879 + $0x10] sm:$0xff]
                %886 = vst [vmem:[%s880 + $0x10] sm:$0xff] %v885
                %v887 = vld [vmem:[%s879 + $0x18] sm:$0xff]
                %888 = vst [vmem:[%s880 + $0x18] sm:$0xff] %v887
                %v889 = vld [vmem:[%s879 + $0x20] sm:$0xff]
                %890 = vst [vmem:[%s880 + $0x20] sm:$0xff] %v889
                %v891 = vld [vmem:[%s879 + $0x28] sm:$0xff]
                %892 = vst [vmem:[%s880 + $0x28] sm:$0xff] %v891
                %v893 = vld [vmem:[%s879 + $0x30] sm:$0xff]
                %894 = vst [vmem:[%s880 + $0x30] sm:$0xff] %v893
                %v895 = vld [vmem:[%s879 + $0x38] sm:$0xff]
                %896 = vst [vmem:[%s880 + $0x38] sm:$0xff] %v895
                %v897 = vld [vmem:[%s879 + $0x40] sm:$0xff]
                %898 = vst [vmem:[%s880 + $0x40] sm:$0xff] %v897
                %v899 = vld [vmem:[%s879 + $0x48] sm:$0xff]
                %900 = vst [vmem:[%s880 + $0x48] sm:$0xff] %v899
                %v901 = vld [vmem:[%s879 + $0x50] sm:$0xff]
                %902 = vst [vmem:[%s880 + $0x50] sm:$0xff] %v901
                %v903 = vld [vmem:[%s879 + $0x58] sm:$0xff]
                %904 = vst [vmem:[%s880 + $0x58] sm:$0xff] %v903
                %v905 = vld [vmem:[%s879 + $0x60] sm:$0xff]
                %906 = vst [vmem:[%s880 + $0x60] sm:$0xff] %v905
                %v907 = vld [vmem:[%s879 + $0x68] sm:$0xff]
                %908 = vst [vmem:[%s880 + $0x68] sm:$0xff] %v907
                %v909 = vld [vmem:[%s879 + $0x70] sm:$0xff]
                %910 = vst [vmem:[%s880 + $0x70] sm:$0xff] %v909
                %v911 = vld [vmem:[%s879 + $0x78] sm:$0xff]
                %912 = vst [vmem:[%s880 + $0x78] sm:$0xff] %v911
                %v913 = vld [vmem:[%s879 + $0x80] sm:$0xff]
                %914 = vst [vmem:[%s880 + $0x80] sm:$0xff] %v913
                %v915 = vld [vmem:[%s879 + $0x88] sm:$0xff]
                %916 = vst [vmem:[%s880 + $0x88] sm:$0xff] %v915
                %v917 = vld [vmem:[%s879 + $0x90] sm:$0xff]
                %918 = vst [vmem:[%s880 + $0x90] sm:$0xff] %v917
                %v919 = vld [vmem:[%s879 + $0x98] sm:$0xff]
                %920 = vst [vmem:[%s880 + $0x98] sm:$0xff] %v919
                %v921 = vld [vmem:[%s879 + $0xa0] sm:$0xff]
                %922 = vst [vmem:[%s880 + $0xa0] sm:$0xff] %v921
                %v923 = vld [vmem:[%s879 + $0xa8] sm:$0xff]
                %924 = vst [vmem:[%s880 + $0xa8] sm:$0xff] %v923
                %v925 = vld [vmem:[%s879 + $0xb0] sm:$0xff]
                %926 = vst [vmem:[%s880 + $0xb0] sm:$0xff] %v925
                %v927 = vld [vmem:[%s879 + $0xb8] sm:$0xff]
                %928 = vst [vmem:[%s880 + $0xb8] sm:$0xff] %v927
                %v929 = vld [vmem:[%s879 + $0xc0] sm:$0xff]
                %930 = vst [vmem:[%s880 + $0xc0] sm:$0xff] %v929
                %v931 = vld [vmem:[%s879 + $0xc8] sm:$0xff]
                %932 = vst [vmem:[%s880 + $0xc8] sm:$0xff] %v931
                %v933 = vld [vmem:[%s879 + $0xd0] sm:$0xff]
                %934 = vst [vmem:[%s880 + $0xd0] sm:$0xff] %v933
                %v935 = vld [vmem:[%s879 + $0xd8] sm:$0xff]
                %936 = vst [vmem:[%s880 + $0xd8] sm:$0xff] %v935
                %v937 = vld [vmem:[%s879 + $0xe0] sm:$0xff]
                %938 = vst [vmem:[%s880 + $0xe0] sm:$0xff] %v937
                %v939 = vld [vmem:[%s879 + $0xe8] sm:$0xff]
                %940 = vst [vmem:[%s880 + $0xe8] sm:$0xff] %v939
                %v941 = vld [vmem:[%s879 + $0xf0] sm:$0xff]
                %942 = vst [vmem:[%s880 + $0xf0] sm:$0xff] %v941
                %v943 = vld [vmem:[%s879 + $0xf8] sm:$0xff]
                %944 = vst [vmem:[%s880 + $0xf8] sm:$0xff] %v943
                %s945 = sadd.s32 1, %s878
                %p946 = scmp.ge.s32.totalorder %s945, %s871
                %s947 = scalar_select %p946, 0, %s945
                %s948 = smul.u32 %s947, 256
                %s949 = smul.u32 %s947, 256
                %s950 = scalar_lea.vmem %s851, %s948 [#allocation4]
                %s951 = scalar_lea.vmem %s862, %s949
              $region65: #{decoder_forward.1} parent=59 // loop_footer
                %s875 = sadd.s32 %s873, 1
              $region66: #{decoder_forward.1} parent=59 // loop_footer_branch
                %872 = sbr.rel target = $region62
              $region67: #{decoder_forward.1} parent=59 // loop_exit
                _
              %s952 = sshrl.u32 %s858, 5
              %s953 = sand.u32 %s858, 31
              %s954 = smul.u32 %s952, 32
              %s955 = smul.u32 8, %s954
              %s956 = scalar_lea.vmem %s851, %s955 [#allocation4]
              %s957 = smul.u32 8, %s954
              %s958 = scalar_lea.vmem %s862, %s957
              // While loop
              $region68: #{decoder_forward.1} parent=59 // loop_pre_header
                _
              $region69: #{decoder_forward.1} parent=59 // loop_header
                %s960 = sphi 0, %s962
                %p961 = scmp.ge.s32.totalorder %s960, %s953
                %s965 = sphi 0, %s972
                %s966 = sphi %s956, %s975
                %s967 = sphi %s958, %s976
              $region70: #{decoder_forward.1} parent=59 // loop_header_branch
                %964 = sbr.rel (%p961) target = $region74
              $region71: #{decoder_forward.1} parent=59 // loop_body
                %v968 = vld [vmem:[%s966] sm:$0xff]
                %969 = vst [vmem:[%s967] sm:$0xff] %v968
                %s970 = sadd.s32 1, %s965
                %p971 = scmp.ge.s32.totalorder %s970, %s953
                %s972 = scalar_select %p971, 0, %s970
                %s973 = smul.u32 %s972, 8
                %s974 = smul.u32 %s972, 8
                %s975 = scalar_lea.vmem %s956, %s973 [#allocation4]
                %s976 = scalar_lea.vmem %s958, %s974
              $region72: #{decoder_forward.1} parent=59 // loop_footer
                %s962 = sadd.s32 %s960, 1
              $region73: #{decoder_forward.1} parent=59 // loop_footer_branch
                %959 = sbr.rel target = $region69
              $region74: #{decoder_forward.1} parent=59 // loop_exit
                _
            $region60: #{decoder_forward.1} parent=51 // pred_fallthru
              _
          $region52: #{decoder_forward.1} parent=47 // pred_fallthru
            _
          %1087 = vnop
        $region48: #{decoder_forward.1} parent=39 // pred_fallthru
          _
      $region40: #{decoder_forward.1} parent=5 // pred_fallthru
        _
      %p1088 = scmp.le.s32.totalorder 2, %s14
      // Predicated region
      $region97: #{decoder_forward.1} parent=5 // pred_check
        %p1089 = pneg %p1088
      $region98: #{decoder_forward.1} parent=5 // pred_check_branch
        %1091 = sbr.rel (%p1089) target = $region100
      $region99: #{decoder_forward.1} parent=5 // pred_region
        %s1092 = ssub.s32 %s14, 2
        // Predicated region
        $region101: #{decoder_forward.1} parent=99 // pred_check
          %p1093 = pneg %p153
        $region102: #{decoder_forward.1} parent=99 // pred_check_branch
          %1095 = sbr.rel (%p1093) target = $region104
        $region103: #{decoder_forward.1} parent=99 // pred_region
          %s1096 = sand.u32 %s138, 1
          %s1097 = sand.u32 %s138, 1
          %s1098 = smul.addr %s1097, 256
          %s1099 = scalar_lea.vmem [#allocation4], %s1098
        $region104: #{decoder_forward.1} parent=99 // pred_fallthru
          _
      $region100: #{decoder_forward.1} parent=5 // pred_fallthru
        _
    $region6: #{decoder_forward.1} parent=1 // loop_footer
      %s18 = sadd.s32 1, %s14
    $region7: #{decoder_forward.1} parent=1 // loop_footer_branch
      %13 = sbr.rel target = $region3
    $region8: #{decoder_forward.1} parent=1 // loop_exit
      _
    %1100 = vsyncpa [#allocation3], 1
    %s1101 = scalar_lea.sflag [#allocation3], 1
    %1102 = vsyncpa %s1101, 1

</llo_original>
